<compile_context>
chip_gen: v5e
topology: v5e:2x2
jax: 0.10.0
libtpu: 0.0.40
codegen_flags: <defaults>
</compile_context>

<pallas_src>
import math

import jax
import jax.numpy as jnp
from jax import lax
from jax.experimental import pallas as pl
from jax.experimental.pallas import tpu as pltpu


# ----------------------------- kernel ---------------------------------------

def mlp_proj_kernel(x_ref, w_ref, b_ref, o_ref):
    """One (batch, token-tile) grid step of the linear-embedding projection.

    x_ref: (1, C, tn) f32   channel-major token tile (straight from NCHW HBM)
    w_ref: (C, E)     bf16  pre-transposed weight, resident across grid steps
    b_ref: (1, E)     f32   bias, resident
    o_ref: (1, tn, E) f32   output tile (lane-dense on E)
    """
    x = x_ref[0].astype(jnp.bfloat16)                   # cast in VMEM, not via HBM
    acc = lax.dot_general(                              # (C, tn) . (C, E) -> (tn, E)
        x, w_ref[...],
        dimension_numbers=(((0,), (0,)), ((), ())),     # contract C (transposed LHS)
        preferred_element_type=jnp.float32)
    o_ref[0] = (acc + b_ref[...]).astype(o_ref.dtype)


# ----------------------------- tiling helper ---------------------------------

def _pick_token_tile(B, N, C, E, *, tn_max=1024, min_steps=4,
                     vmem_budget=24 << 20):
    """Largest 128-multiple token tile that (a) keeps a conservative VMEM
    footprint (double-buffered input/output tiles + resident weight) and
    (b) leaves at least `min_steps` grid steps so both v7x TCs get work."""
    if N <= 128:
        return N                                        # full dim is always legal

    tn = min(tn_max, (N // 128) * 128)

    def vmem_bytes(t):
        return 2 * (C * t * 4) + 2 * (t * E * 4) + C * E * 2

    while tn > 128 and vmem_bytes(tn) > vmem_budget:
        tn -= 128
    while tn > 128 and B * pl.cdiv(N, tn) < min_steps:
        tn = max(128, ((tn // 2) // 128) * 128)
    return tn


# ----------------------------- wrapper ---------------------------------------

@jax.jit
def mlp_forward(x, w, b):
    """
    x: (B, C, H, W) float32   -- NCHW input, like the PyTorch module
    w: (E, C)       float32   -- torch nn.Linear weight layout
    b: (E,)         float32
    returns (B, H*W, E) float32  ==  proj(x.flatten(2).transpose(1, 2))
    """
    B, C, H, W = x.shape
    E = w.shape[0]
    N = H * W

    x_cn = x.reshape(B, C, N)                     # free view; NO transpose/cast/pad
    w_t = jnp.transpose(w).astype(jnp.bfloat16)   # (C, E), tiny, one-time
    b2 = b.reshape(1, E).astype(jnp.float32)

    tn = _pick_token_tile(B, N, C, E)
    grid = (B, pl.cdiv(N, tn))                    # ragged tail handled by Pallas

    flops = 2 * B * N * C * E
    bytes_accessed = B * N * C * 4 + C * E * 2 + E * 4 + B * N * E * 4

    out = pl.pallas_call(
        mlp_proj_kernel,
        out_shape=jax.ShapeDtypeStruct((B, N, E), jnp.float32),
        grid=grid,
        in_specs=[
            pl.BlockSpec((1, C, tn), lambda bi, ni: (bi, 0, ni)),  # token tile
            pl.BlockSpec((C, E), lambda bi, ni: (0, 0)),           # resident weight
            pl.BlockSpec((1, E), lambda bi, ni: (0, 0)),           # resident bias
        ],
        out_specs=pl.BlockSpec((1, tn, E), lambda bi, ni: (bi, ni, 0)),
        compiler_params=pltpu.CompilerParams(
            dimension_semantics=("parallel", "parallel"),
            vmem_limit_bytes=32 * 1024 * 1024),     # raise v5e's 16 MiB default
        cost_estimate=pl.CostEstimate(
            flops=flops, transcendentals=0, bytes_accessed=bytes_accessed),
    )(x_cn, w_t, b2)

    return out


# ----------------------------- main -------------------------------------------

if __name__ == "__main__":
    # MLP(input_dim=128, embed_dim=256) on a (B=2, C=128, H=16, W=16) feature
    # map (small stand-in for the 512 -> 768 defaults; C, E multiples of 128
    # keep the kernel lane-dense; N=256 exercises the token-tile grid).
    B, C, H, W = 2, 128, 16, 16
    E = 256

    key = jax.random.PRNGKey(0)
    kx, kw, kb = jax.random.split(key, 3)
    x = jax.random.normal(kx, (B, C, H, W), jnp.float32)
    w = jax.random.normal(kw, (E, C), jnp.float32) * (1.0 / math.sqrt(C))
    b = jax.random.normal(kb, (E,), jnp.float32) * 0.02

    out = jax.block_until_ready(mlp_forward(x, w, b))

    # Pure-JAX f32 reference of the PyTorch forward (bf16 MXU operands in the
    # kernel -> loosened tolerance; accumulation is f32).
    ref = jnp.einsum("bcn,ec->bne", x.reshape(B, C, H * W), w) + b

    assert out.shape == (B, H * W, E)
    assert bool(jnp.all(jnp.isfinite(out)))
    err = float(jnp.max(jnp.abs(out - ref)))
    assert jnp.allclose(out, ref, rtol=2e-2, atol=5e-2), err
    print("KERNEL_OK")
</pallas_src>

<mosaic_0001>
module attributes {stable_mosaic.version = 11 : i64} {
  func.func @mlp_proj_kernel(%arg0: i32, %arg1: i32, %arg2: memref<1x128x128xf32, #tpu.memory_space<vmem>>, %arg3: memref<128x256xbf16, #tpu.memory_space<vmem>>, %arg4: memref<1x256xf32, #tpu.memory_space<vmem>>, %arg5: memref<1x128x256xf32, #tpu.memory_space<vmem>>) attributes {dimension_semantics = [#tpu.dimension_semantics<parallel>, #tpu.dimension_semantics<parallel>], iteration_bounds = array<i64: 2, 2>, scalar_prefetch = 0 : i64, scratch_operands = 0 : i64, tpu.core_type = #tpu.core_type<tc>, window_params = [{transform_indices = @transform_0, window_bounds = array<i64: 1, 128, 128>}, {pipeline_mode = #tpu.pipeline_mode<synchronous>, transform_indices = @transform_1, window_bounds = array<i64: 128, 256>}, {pipeline_mode = #tpu.pipeline_mode<synchronous>, transform_indices = @transform_2, window_bounds = array<i64: 1, 256>}, {transform_indices = @transform_3, window_bounds = array<i64: 1, 128, 256>}]} {
    %c0 = arith.constant 0 : index
    %c0_0 = arith.constant 0 : index
    %c0_1 = arith.constant 0 : index
    %0 = vector.load %arg2[%c0, %c0_0, %c0_1] : memref<1x128x128xf32, #tpu.memory_space<vmem>>, vector<1x128x128xf32>
    %1 = vector.shape_cast %0 : vector<1x128x128xf32> to vector<128x128xf32>
    %2 = arith.truncf %1 : vector<128x128xf32> to vector<128x128xbf16>
    %c0_2 = arith.constant 0 : index
    %c0_3 = arith.constant 0 : index
    %3 = vector.load %arg3[%c0_2, %c0_3] : memref<128x256xbf16, #tpu.memory_space<vmem>>, vector<128x256xbf16>
    %cst = arith.constant dense<0.000000e+00> : vector<128x256xf32>
    %4 = tpu.matmul %2, %3, %cst {dimension_numbers = #tpu.dot_dimension_numbers<[0], [0], [1], [1], [0, 1, 1, 1], [], []>} : vector<128x128xbf16>, vector<128x256xbf16>, vector<128x256xf32> -> vector<128x256xf32>
    %c0_4 = arith.constant 0 : index
    %c0_5 = arith.constant 0 : index
    %5 = vector.load %arg4[%c0_4, %c0_5] : memref<1x256xf32, #tpu.memory_space<vmem>>, vector<1x256xf32>
    %6 = vector.broadcast %5 : vector<1x256xf32> to vector<128x256xf32>
    %7 = arith.addf %4, %6 : vector<128x256xf32>
    %c0_6 = arith.constant 0 : index
    %c0_7 = arith.constant 0 : index
    %c0_8 = arith.constant 0 : index
    %8 = vector.load %arg5[%c0_6, %c0_7, %c0_8] : memref<1x128x256xf32, #tpu.memory_space<vmem>>, vector<1x128x256xf32>
    %9 = vector.shape_cast %8 : vector<1x128x256xf32> to vector<128x256xf32>
    %10 = vector.shape_cast %7 : vector<128x256xf32> to vector<1x128x256xf32>
    tpu.vector_store %arg5[%c0_6, %c0_7, %c0_8], %10 {strides = array<i32>} : memref<1x128x256xf32, #tpu.memory_space<vmem>>, vector<1x128x256xf32>,
    return
  }
  func.func @transform_0(%arg0: i32, %arg1: i32) -> (i32, i32, i32) {
    %c0_i32 = arith.constant 0 : i32
    %c0_i32_0 = arith.constant 0 : i32
    return %arg0, %c0_i32, %arg1 : i32, i32, i32
  }
  func.func @transform_1(%arg0: i32, %arg1: i32) -> (i32, i32) {
    %c0_i32 = arith.constant 0 : i32
    %c0_i32_0 = arith.constant 0 : i32
    %c0_i32_1 = arith.constant 0 : i32
    return %c0_i32, %c0_i32_0 : i32, i32
  }
  func.func @transform_2(%arg0: i32, %arg1: i32) -> (i32, i32) {
    %c0_i32 = arith.constant 0 : i32
    %c0_i32_0 = arith.constant 0 : i32
    %c0_i32_1 = arith.constant 0 : i32
    return %c0_i32, %c0_i32_0 : i32, i32
  }
  func.func @transform_3(%arg0: i32, %arg1: i32) -> (i32, i32, i32) {
    %c0_i32 = arith.constant 0 : i32
    %c0_i32_0 = arith.constant 0 : i32
    return %arg0, %arg1, %c0_i32 : i32, i32, i32
  }
}

</mosaic_0001>

<llo_original>
// kernel: mlp_forward.1
$region0: #{mlp_forward.1}
  #allocation0 [shape = 'u32[]', space=smem, size = 0x4, offset = 0x4, fixed_abs, tag = 'smem constant byte address 0x4 - core index']
  #allocation1 [shape = 'u32[72,128]{1,0:T(1,128)}', space=vmem, size = 0x9000, scoped, tag = 'internal scratch']
  %s0 = inlined_call_operand.vmem [shape: f32[2,128,256], index: 0, kind: input, shape index: {}]
  %s1 = inlined_call_operand.vmem [shape: bf16[128,256], index: 1, kind: input, shape index: {}]
  %s2 = inlined_call_operand.vmem [shape: f32[1,256], index: 2, kind: input, shape index: {}]
  %s3 = inlined_call_operand.hbm [shape: f32[2,256,256], index: 3, kind: output, shape index: {}]
  %s4 = sld [smem:[#allocation0]]
  $region83: #{mlp_forward.1} parent=0
    _
  %s6 = ssub.s32 1, %s4
  %s7 = scalar_select 0, %s6, %s4
  $region1: #{mlp_forward.1} parent=0
    #allocation2 [shape = 'u8[131072]{0}', space=vmem, size = 0x20000, scoped, tag = 'input window, operand 0']
    #allocation3 [shape = 'u8[262144]{0}', space=vmem, size = 0x40000, scoped, tag = 'output window, operand 0']
    #allocation4 [shape = 's32[2]{0}', space=sflag, size = 0x8, scoped, tag = 'scoped memory for mlp_forward.1']
    %8 = vsyncpa [#allocation4], 0
    %s9 = scalar_lea.sflag [#allocation4], 1
    %10 = vsyncpa %s9, 0
    loop: start=0, step=1, limit=6
    $region2: #{mlp_forward.1} parent=1 // loop_pre_header
      _
    $region3: #{mlp_forward.1} parent=1 // loop_header
      %s12 = sphi 0, %s16
      %p13 = scmp.ge.s32.totalorder %s12, 6
      %s19 = sphi 0, %s31
      %s20 = sphi 0, %s27
      %s21 = sphi 0, %s19
      %s22 = sphi 0, %s20
      %s23 = sphi 0, %s21
      %s24 = sphi 0, %s22
      %s36 = sphi 0, %s38
      %s39 = sphi 0, %s36
      %s40 = sphi 0, %s39
      %s56 = sphi 0, %s40
      %s60 = sphi 0, %s60
      %s62 = sphi 0, %s60
      %s63 = sphi 0, %s62
      %s77 = sphi 0, %s63
      %s81 = sphi 0, %s81
      %s83 = sphi 0, %s81
      %s84 = sphi 0, %s83
      %s98 = sphi 0, %s84
      %s106 = sphi 0, %s108
      %s109 = sphi 0, %s106
      %s110 = sphi 0, %s109
      %s126 = sphi 0, %s110
    $region4: #{mlp_forward.1} parent=1 // loop_header_branch
      %15 = sbr.rel (%p13) target = $region8
    $region5: #{mlp_forward.1} parent=1 // loop_body
      %s17 = ssub.s32 %s12, 1
      %s18 = ssub.s32 %s12, 2
      %s25 = sadd.s32 1, %s20
      %p26 = scmp.ge.s32.totalorder %s25, 2
      %s27 = scalar_select %p26, 0, %s25
      %s28 = sadd.s32 1, %s19
      %s29 = scalar_select %p26, %s28, %s19
      %p30 = scmp.ge.s32.totalorder %s29, 2
      %s31 = scalar_select %p30, 0, %s29
      %s32 = ssub.s32 %s19, %s31
      %s33 = ssub.s32 %s20, %s27
      %s34 = sor.u32 %s32, %s33
      %p35 = scmp.eq.s32.totalorder %s34, 0
      %s37 = sadd.s32 %s36, 1
      %s38 = scalar_select %p35, %s36, %s37
      %p41 = pneg %p35
      %p42 = scmp.eq.s32.totalorder %s12, 3
      %p43 = por %p41, %p42
      %p44 = scmp.ne.s32.totalorder %s36, %s39
      %p45 = scmp.eq.s32.totalorder %s12, 0
      %p46 = por %p44, %p45
      %p47 = scmp.ne.s32.totalorder %s36, %s39
      %p48 = scmp.eq.s32.totalorder %s17, 3
      %p49 = por %p47, %p48
      %p50 = scmp.ne.s32.totalorder %s39, %s40
      %p51 = scmp.eq.s32.totalorder %s17, 0
      %p52 = por %p50, %p51
      %p53 = scmp.ne.s32.totalorder %s39, %s40
      %p54 = scmp.eq.s32.totalorder %s18, 3
      %p55 = por %p53, %p54
      %p57 = scmp.ne.s32.totalorder %s40, %s56
      %p58 = scmp.eq.s32.totalorder %s18, 0
      %p59 = por %p57, %p58
      %s61 = sadd.s32 %s60, 1
      %p64 = scmp.eq.s32.totalorder %s12, 3
      %p65 = scmp.ne.s32.totalorder %s60, %s62
      %p66 = scmp.eq.s32.totalorder %s12, 0
      %p67 = por %p65, %p66
      %p68 = scmp.ne.s32.totalorder %s60, %s62
      %p69 = scmp.eq.s32.totalorder %s17, 3
      %p70 = por %p68, %p69
      %p71 = scmp.ne.s32.totalorder %s62, %s63
      %p72 = scmp.eq.s32.totalorder %s17, 0
      %p73 = por %p71, %p72
      %p74 = scmp.ne.s32.totalorder %s62, %s63
      %p75 = scmp.eq.s32.totalorder %s18, 3
      %p76 = por %p74, %p75
      %p78 = scmp.ne.s32.totalorder %s63, %s77
      %p79 = scmp.eq.s32.totalorder %s18, 0
      %p80 = por %p78, %p79
      %s82 = sadd.s32 %s81, 1
      %p85 = scmp.eq.s32.totalorder %s12, 3
      %p86 = scmp.ne.s32.totalorder %s81, %s83
      %p87 = scmp.eq.s32.totalorder %s12, 0
      %p88 = por %p86, %p87
      %p89 = scmp.ne.s32.totalorder %s81, %s83
      %p90 = scmp.eq.s32.totalorder %s17, 3
      %p91 = por %p89, %p90
      %p92 = scmp.ne.s32.totalorder %s83, %s84
      %p93 = scmp.eq.s32.totalorder %s17, 0
      %p94 = por %p92, %p93
      %p95 = scmp.ne.s32.totalorder %s83, %s84
      %p96 = scmp.eq.s32.totalorder %s18, 3
      %p97 = por %p95, %p96
      %p99 = scmp.ne.s32.totalorder %s84, %s98
      %p100 = scmp.eq.s32.totalorder %s18, 0
      %p101 = por %p99, %p100
      %s102 = ssub.s32 %s19, %s31
      %s103 = ssub.s32 %s20, %s27
      %s104 = sor.u32 %s102, %s103
      %p105 = scmp.eq.s32.totalorder %s104, 0
      %s107 = sadd.s32 %s106, 1
      %s108 = scalar_select %p105, %s106, %s107
      %p111 = pneg %p105
      %p112 = scmp.eq.s32.totalorder %s12, 3
      %p113 = por %p111, %p112
      %p114 = scmp.ne.s32.totalorder %s106, %s109
      %p115 = scmp.eq.s32.totalorder %s12, 0
      %p116 = por %p114, %p115
      %p117 = scmp.ne.s32.totalorder %s106, %s109
      %p118 = scmp.eq.s32.totalorder %s17, 3
      %p119 = por %p117, %p118
      %p120 = scmp.ne.s32.totalorder %s109, %s110
      %p121 = scmp.eq.s32.totalorder %s17, 0
      %p122 = por %p120, %p121
      %p123 = scmp.ne.s32.totalorder %s109, %s110
      %p124 = scmp.eq.s32.totalorder %s18, 3
      %p125 = por %p123, %p124
      %p127 = scmp.ne.s32.totalorder %s110, %s126
      %p128 = scmp.eq.s32.totalorder %s18, 0
      %p129 = por %p127, %p128
      %p130 = scmp.le.s32.totalorder 1, %s12
      %p131 = scmp.lt.s32.totalorder %s12, 5
      %p132 = pnand %p130, %p131
      %p133 = pneg %p132
      // Predicated region
      $region9: #{mlp_forward.1} parent=5 // pred_check
        _
      $region10: #{mlp_forward.1} parent=5 // pred_check_branch
        %135 = sbr.rel (%p132) target = $region12
      $region11: #{mlp_forward.1} parent=5 // pred_region
        %s136 = ssub.s32 %s12, 1
        // Predicated region
        $region13: #{mlp_forward.1} parent=11 // pred_check
          %p137 = pneg %p73
        $region14: #{mlp_forward.1} parent=11 // pred_check_branch
          %139 = sbr.rel (%p137) target = $region16
        $region15: #{mlp_forward.1} parent=11 // pred_region
          _
        $region16: #{mlp_forward.1} parent=11 // pred_fallthru
          _
        // Predicated region
        $region17: #{mlp_forward.1} parent=11 // pred_check
          %p140 = pneg %p94
        $region18: #{mlp_forward.1} parent=11 // pred_check_branch
          %142 = sbr.rel (%p140) target = $region20
        $region19: #{mlp_forward.1} parent=11 // pred_region
          _
        $region20: #{mlp_forward.1} parent=11 // pred_fallthru
          _
      $region12: #{mlp_forward.1} parent=5 // pred_fallthru
        _
      %p143 = scmp.lt.s32.totalorder %s12, 4
      // Predicated region
      $region21: #{mlp_forward.1} parent=5 // pred_check
        %p144 = pneg %p143
      $region22: #{mlp_forward.1} parent=5 // pred_check_branch
        %146 = sbr.rel (%p144) target = $region24
      $region23: #{mlp_forward.1} parent=5 // pred_region
        // Predicated region
        $region25: #{mlp_forward.1} parent=23 // pred_check
          %p147 = pneg %p46
        $region26: #{mlp_forward.1} parent=23 // pred_check_branch
          %149 = sbr.rel (%p147) target = $region28
        $region27: #{mlp_forward.1} parent=23 // pred_region
          %s150 = sand.u32 %s36, 1
          %s151 = sand.u32 %s36, 1
          %s152 = smul.addr %s151, 128
          %s153 = scalar_lea.vmem [#allocation2], %s152
          %s154 = smul.addr %s19, 32
          %s155 = sadd.s32 %s20, %s154
          %s156 = smul.addr %s155, 8
          %s157 = scalar_lea.vmem %s0, %s156
          // Predicated region
          $region29: #{mlp_forward.1} parent=27 // pred_check
            _
          $region30: #{mlp_forward.1} parent=27 // pred_check_branch
            %159 = sbr.rel (0) target = $region32
          $region31: #{mlp_forward.1} parent=27 // pred_region
            // Predicated region
            $region33: #{mlp_forward.1} parent=31 // pred_check
              _
            $region34: #{mlp_forward.1} parent=31 // pred_check_branch
              %161 = sbr.rel (0) target = $region36
            $region35: #{mlp_forward.1} parent=31 // pred_region
              // Predicated region
              $region48: #{mlp_forward.1} parent=35 // pred_check
                _
              $region49: #{mlp_forward.1} parent=35 // pred_check_branch
                %207 = sbr.rel (0) target = $region51
              $region50: #{mlp_forward.1} parent=35 // pred_region
                loop: start=0, step=1, limit=1
                $region52: #{mlp_forward.1} parent=50 // loop_pre_header
                  _
                $region53: #{mlp_forward.1} parent=50 // loop_header
                  %s209 = sphi 0, %s213
                  %p210 = scmp.ge.s32.totalorder %s209, 1
                  %s214 = sphi %s157, %s157
                  %s215 = sphi %s153, %s153
                $region54: #{mlp_forward.1} parent=50 // loop_header_branch
                  %212 = sbr.rel (%p210) target = $region58
                $region55: #{mlp_forward.1} parent=50 // loop_body
                  %v216 = vld [vmem:[%s214] sm:$0xff]
                  %217 = vst [vmem:[%s215] sm:$0xff] %v216
                  %v218 = vld [vmem:[%s214 + $0x10] sm:$0xff]
                  %219 = vst [vmem:[%s215 + $0x8] sm:$0xff] %v218
                  %v220 = vld [vmem:[%s214 + $0x20] sm:$0xff]
                  %221 = vst [vmem:[%s215 + $0x10] sm:$0xff] %v220
                  %v222 = vld [vmem:[%s214 + $0x30] sm:$0xff]
                  %223 = vst [vmem:[%s215 + $0x18] sm:$0xff] %v222
                  %v224 = vld [vmem:[%s214 + $0x40] sm:$0xff]
                  %225 = vst [vmem:[%s215 + $0x20] sm:$0xff] %v224
                  %v226 = vld [vmem:[%s214 + $0x50] sm:$0xff]
                  %227 = vst [vmem:[%s215 + $0x28] sm:$0xff] %v226
                  %v228 = vld [vmem:[%s214 + $0x60] sm:$0xff]
                  %229 = vst [vmem:[%s215 + $0x30] sm:$0xff] %v228
                  %v230 = vld [vmem:[%s214 + $0x70] sm:$0xff]
                  %231 = vst [vmem:[%s215 + $0x38] sm:$0xff] %v230
                  %v232 = vld [vmem:[%s214 + $0x80] sm:$0xff]
                  %233 = vst [vmem:[%s215 + $0x40] sm:$0xff] %v232
                  %v234 = vld [vmem:[%s214 + $0x90] sm:$0xff]
                  %235 = vst [vmem:[%s215 + $0x48] sm:$0xff] %v234
                  %v236 = vld [vmem:[%s214 + $0xa0] sm:$0xff]
                  %237 = vst [vmem:[%s215 + $0x50] sm:$0xff] %v236
                  %v238 = vld [vmem:[%s214 + $0xb0] sm:$0xff]
                  %239 = vst [vmem:[%s215 + $0x58] sm:$0xff] %v238
                  %v240 = vld [vmem:[%s214 + $0xc0] sm:$0xff]
                  %241 = vst [vmem:[%s215 + $0x60] sm:$0xff] %v240
                  %v242 = vld [vmem:[%s214 + $0xd0] sm:$0xff]
                  %243 = vst [vmem:[%s215 + $0x68] sm:$0xff] %v242
                  %v244 = vld [vmem:[%s214 + $0xe0] sm:$0xff]
                  %245 = vst [vmem:[%s215 + $0x70] sm:$0xff] %v244
                  %v246 = vld [vmem:[%s214 + $0xf0] sm:$0xff]
                  %247 = vst [vmem:[%s215 + $0x78] sm:$0xff] %v246
                $region56: #{mlp_forward.1} parent=50 // loop_footer
                  %s213 = sadd.s32 1, %s209
                $region57: #{mlp_forward.1} parent=50 // loop_footer_branch
                  %208 = sbr.rel target = $region53
                $region58: #{mlp_forward.1} parent=50 // loop_exit
                  _
              $region51: #{mlp_forward.1} parent=35 // pred_fallthru
                _
              // Predicated region
              $region59: #{mlp_forward.1} parent=35 // pred_check
                _
              $region60: #{mlp_forward.1} parent=35 // pred_check_branch
                %249 = sbr.rel target = $region62
              $region61: #{mlp_forward.1} parent=35 // pred_region
                _
              $region62: #{mlp_forward.1} parent=35 // pred_fallthru
                _
            $region36: #{mlp_forward.1} parent=31 // pred_fallthru
              _
            // Predicated region
            $region37: #{mlp_forward.1} parent=31 // pred_check
              _
            $region38: #{mlp_forward.1} parent=31 // pred_check_branch
              %163 = sbr.rel target = $region40
            $region39: #{mlp_forward.1} parent=31 // pred_region
              %s165 = ssub.s32 256, 1
              loop: start=0, step=1, limit=1
              $region41: #{mlp_forward.1} parent=39 // loop_pre_header
                _
              $region42: #{mlp_forward.1} parent=39 // loop_header
                %s167 = sphi 0, %s171
                %p168 = scmp.ge.s32.totalorder %s167, 1
                %s172 = sphi %s157, %s157
                %s173 = sphi %s153, %s153
              $region43: #{mlp_forward.1} parent=39 // loop_header_branch
                %170 = sbr.rel (%p168) target = $region47
              $region44: #{mlp_forward.1} parent=39 // loop_body
                %v174 = vld [vmem:[%s172] sm:%s165]
                %175 = vst [vmem:[%s173] sm:%s165] %v174
                %v176 = vld [vmem:[%s172 + $0x10] sm:%s165]
                %177 = vst [vmem:[%s173 + $0x8] sm:%s165] %v176
                %v178 = vld [vmem:[%s172 + $0x20] sm:%s165]
                %179 = vst [vmem:[%s173 + $0x10] sm:%s165] %v178
                %v180 = vld [vmem:[%s172 + $0x30] sm:%s165]
                %181 = vst [vmem:[%s173 + $0x18] sm:%s165] %v180
                %v182 = vld [vmem:[%s172 + $0x40] sm:%s165]
                %183 = vst [vmem:[%s173 + $0x20] sm:%s165] %v182
                %v184 = vld [vmem:[%s172 + $0x50] sm:%s165]
                %185 = vst [vmem:[%s173 + $0x28] sm:%s165] %v184
                %v186 = vld [vmem:[%s172 + $0x60] sm:%s165]
                %187 = vst [vmem:[%s173 + $0x30] sm:%s165] %v186
                %v188 = vld [vmem:[%s172 + $0x70] sm:%s165]
                %189 = vst [vmem:[%s173 + $0x38] sm:%s165] %v188
                %v190 = vld [vmem:[%s172 + $0x80] sm:%s165]
                %191 = vst [vmem:[%s173 + $0x40] sm:%s165] %v190
                %v192 = vld [vmem:[%s172 + $0x90] sm:%s165]
                %193 = vst [vmem:[%s173 + $0x48] sm:%s165] %v192
                %v194 = vld [vmem:[%s172 + $0xa0] sm:%s165]
                %195 = vst [vmem:[%s173 + $0x50] sm:%s165] %v194
                %v196 = vld [vmem:[%s172 + $0xb0] sm:%s165]
                %197 = vst [vmem:[%s173 + $0x58] sm:%s165] %v196
                %v198 = vld [vmem:[%s172 + $0xc0] sm:%s165]
                %199 = vst [vmem:[%s173 + $0x60] sm:%s165] %v198
                %v200 = vld [vmem:[%s172 + $0xd0] sm:%s165]
                %201 = vst [vmem:[%s173 + $0x68] sm:%s165] %v200
                %v202 = vld [vmem:[%s172 + $0xe0] sm:%s165]
                %203 = vst [vmem:[%s173 + $0x70] sm:%s165] %v202
                %v204 = vld [vmem:[%s172 + $0xf0] sm:%s165]
                %205 = vst [vmem:[%s173 + $0x78] sm:%s165] %v204
              $region45: #{mlp_forward.1} parent=39 // loop_footer
                %s171 = sadd.s32 1, %s167
              $region46: #{mlp_forward.1} parent=39 // loop_footer_branch
                %166 = sbr.rel target = $region42
              $region47: #{mlp_forward.1} parent=39 // loop_exit
                _
            $region40: #{mlp_forward.1} parent=31 // pred_fallthru
              _
          $region32: #{mlp_forward.1} parent=27 // pred_fallthru
            _
          %250 = vnop
        $region28: #{mlp_forward.1} parent=23 // pred_fallthru
          _
      $region24: #{mlp_forward.1} parent=5 // pred_fallthru
        _
      %p251 = scmp.le.s32.totalorder 1, %s12
      %p252 = scmp.lt.s32.totalorder %s12, 5
      %p253 = pnand %p251, %p252
      %p254 = pneg %p253
      // Predicated region
      $region63: #{mlp_forward.1} parent=5 // pred_check
        _
      $region64: #{mlp_forward.1} parent=5 // pred_check_branch
        %256 = sbr.rel (%p253) target = $region66
      $region65: #{mlp_forward.1} parent=5 // pred_region
        %s257 = ssub.s32 %s12, 1
        %s258 = sand.u32 %s39, 1
        %s259 = sand.u32 %s39, 1
        %s260 = smul.addr %s259, 128
        %s261 = scalar_lea.vmem [#allocation2], %s260
        // Predicated region
        $region67: #{mlp_forward.1} parent=65 // pred_check
          %p262 = pneg %p52
        $region68: #{mlp_forward.1} parent=65 // pred_check_branch
          %264 = sbr.rel (%p262) target = $region70
        $region69: #{mlp_forward.1} parent=65 // pred_region
          _
        $region70: #{mlp_forward.1} parent=65 // pred_fallthru
          _
        %s265 = sand.u32 %s39, 1
        %s266 = sand.u32 %s39, 1
        %s267 = smul.addr %s266, 128
        %s268 = scalar_lea.vmem [#allocation2], %s267
        %p269 = pneg %p52
        %p270 = pneg %p49
        %p271 = pneg %p73
        %p272 = pneg %p70
        %p273 = pneg %p94
        %p274 = pneg %p91
        %p275 = pneg %p122
        %p276 = pneg %p119
        %s277 = sand.u32 %s109, 1
        %s278 = scalar_lea.sflag [#allocation4], %s277
        %s279 = sand.u32 %s109, 1
        %s280 = smul.addr %s279, 256
        %s281 = scalar_lea.vmem [#allocation3], %s280
        %s282 = smul.u32 16, %s22
        %v283 = vld [vmem:[%s261] sm:$0xff]
        %v284 = vld [vmem:[%s261 + $0x8] sm:$0xff]
        %v285 = vld [vmem:[%s261 + $0x10] sm:$0xff]
        %v286 = vld [vmem:[%s261 + $0x18] sm:$0xff]
        %v287 = vld [vmem:[%s261 + $0x20] sm:$0xff]
        %v288 = vld [vmem:[%s261 + $0x28] sm:$0xff]
        %v289 = vld [vmem:[%s261 + $0x30] sm:$0xff]
        %v290 = vld [vmem:[%s261 + $0x38] sm:$0xff]
        %v291 = vld [vmem:[%s261 + $0x40] sm:$0xff]
        %v292 = vld [vmem:[%s261 + $0x48] sm:$0xff]
        %v293 = vld [vmem:[%s261 + $0x50] sm:$0xff]
        %v294 = vld [vmem:[%s261 + $0x58] sm:$0xff]
        %v295 = vld [vmem:[%s261 + $0x60] sm:$0xff]
        %v296 = vld [vmem:[%s261 + $0x68] sm:$0xff]
        %v297 = vld [vmem:[%s261 + $0x70] sm:$0xff]
        %v298 = vld [vmem:[%s261 + $0x78] sm:$0xff]
        %v299 = vpack.c.bf16 %v284, %v283
        %v300 = vpack.c.bf16 %v286, %v285
        %v301 = vpack.c.bf16 %v288, %v287
        %v302 = vpack.c.bf16 %v290, %v289
        %v303 = vpack.c.bf16 %v292, %v291
        %v304 = vpack.c.bf16 %v294, %v293
        %v305 = vpack.c.bf16 %v296, %v295
        %v306 = vpack.c.bf16 %v298, %v297
        %v307 = vld [vmem:[%s1] sm:$0xff]
        %v308 = vld [vmem:[%s1 + $0x8] sm:$0xff]
        %v309 = vld [vmem:[%s1 + $0x10] sm:$0xff]
        %v310 = vld [vmem:[%s1 + $0x18] sm:$0xff]
        %v311 = vld [vmem:[%s1 + $0x20] sm:$0xff]
        %v312 = vld [vmem:[%s1 + $0x28] sm:$0xff]
        %v313 = vld [vmem:[%s1 + $0x30] sm:$0xff]
        %v314 = vld [vmem:[%s1 + $0x38] sm:$0xff]
        %v315 = vld [vmem:[%s1 + $0x40] sm:$0xff]
        %v316 = vld [vmem:[%s1 + $0x48] sm:$0xff]
        %v317 = vld [vmem:[%s1 + $0x50] sm:$0xff]
        %v318 = vld [vmem:[%s1 + $0x58] sm:$0xff]
        %v319 = vld [vmem:[%s1 + $0x60] sm:$0xff]
        %v320 = vld [vmem:[%s1 + $0x68] sm:$0xff]
        %v321 = vld [vmem:[%s1 + $0x70] sm:$0xff]
        %v322 = vld [vmem:[%s1 + $0x78] sm:$0xff]
        %v323 = vld [vmem:[%s2] sm:$0x3]
        %v325 = vperm.slane %v323, 0
        %v326 = vperm.slane %v323, 1
        %329 = vxpose.xlu0.c.b16.start [1/8] %v299, 128
        %330 = vxpose.xlu0.c.b16.cont [2/8] %v300, 128
        %331 = vxpose.xlu0.c.b16.cont [3/8] %v301, 128
        %332 = vxpose.xlu0.c.b16.cont [4/8] %v302, 128
        %333 = vxpose.xlu0.c.b16.cont [5/8] %v303, 128
        %334 = vxpose.xlu0.c.b16.cont [6/8] %v304, 128
        %335 = vxpose.xlu0.c.b16.cont [7/8] %v305, 128
        %336 = vxpose.xlu0.c.b16.end [8/8] %v306, 128
        %v337 = vpop.trf.xlu0
        %v338 = vpop.trf.xlu0
        %v339 = vpop.trf.xlu0
        %v340 = vpop.trf.xlu0
        %v341 = vpop.trf.xlu0
        %v342 = vpop.trf.xlu0
        %v343 = vpop.trf.xlu0
        %v344 = vpop.trf.xlu0
        %v361 = vunpack.c.l.b16 %v307
        %v362 = vunpack.c.h.b16 %v307
        %v363 = vunpack.c.l.b16 %v308
        %v364 = vunpack.c.h.b16 %v308
        %v365 = vunpack.c.l.b16 %v309
        %v366 = vunpack.c.h.b16 %v309
        %v367 = vunpack.c.l.b16 %v310
        %v368 = vunpack.c.h.b16 %v310
        %v369 = vunpack.c.l.b16 %v311
        %v370 = vunpack.c.h.b16 %v311
        %v371 = vunpack.c.l.b16 %v312
        %v372 = vunpack.c.h.b16 %v312
        %v373 = vunpack.c.l.b16 %v313
        %v374 = vunpack.c.h.b16 %v313
        %v375 = vunpack.c.l.b16 %v314
        %v376 = vunpack.c.h.b16 %v314
        %v377 = vunpack.c.l.b16 %v315
        %v378 = vunpack.c.h.b16 %v315
        %v379 = vunpack.c.l.b16 %v316
        %v380 = vunpack.c.h.b16 %v316
        %v381 = vunpack.c.l.b16 %v317
        %v382 = vunpack.c.h.b16 %v317
        %v383 = vunpack.c.l.b16 %v318
        %v384 = vunpack.c.h.b16 %v318
        %v385 = vunpack.c.l.b16 %v319
        %v386 = vunpack.c.h.b16 %v319
        %v387 = vunpack.c.l.b16 %v320
        %v388 = vunpack.c.h.b16 %v320
        %v389 = vunpack.c.l.b16 %v321
        %v390 = vunpack.c.h.b16 %v321
        %v391 = vunpack.c.l.b16 %v322
        %v392 = vunpack.c.h.b16 %v322
        %v393 = vpack.c.b16 %v363, %v361
        %v394 = vpack.c.b16 %v364, %v362
        %v395 = vpack.c.b16 %v367, %v365
        %v396 = vpack.c.b16 %v368, %v366
        %v397 = vpack.c.b16 %v371, %v369
        %v398 = vpack.c.b16 %v372, %v370
        %v399 = vpack.c.b16 %v375, %v373
        %v400 = vpack.c.b16 %v376, %v374
        %v401 = vpack.c.b16 %v379, %v377
        %v402 = vpack.c.b16 %v380, %v378
        %v403 = vpack.c.b16 %v383, %v381
        %v404 = vpack.c.b16 %v384, %v382
        %v405 = vpack.c.b16 %v387, %v385
        %v406 = vpack.c.b16 %v388, %v386
        %v407 = vpack.c.b16 %v391, %v389
        %v408 = vpack.c.b16 %v392, %v390
        %425 = vmatpush.bf16.msra.mxu0 %v407
        %426 = vmatpush.bf16.msra.mxu0 %v405
        %427 = vmatpush.bf16.msra.mxu0 %v403
        %428 = vmatpush.bf16.msra.mxu0 %v401
        %429 = vmatpush.bf16.msra.mxu0 %v399
        %430 = vmatpush.bf16.msra.mxu0 %v397
        %431 = vmatpush.bf16.msra.mxu0 %v395
        %432 = vmatpush.bf16.msra.mxu0 %v393
        %433 = vmatmul.bf16.gmra.mxu0 %v337
        %v434 = vpop.f32.mrf.mxu0
        %v435 = vadd.f32 %v325, %v434
        %v436 = vpop.f32.mrf.mxu0
        %v437 = vadd.f32 %v325, %v436
        %438 = vmatmul.bf16.gmra.mxu0 %v338
        %v439 = vpop.f32.mrf.mxu0
        %v440 = vadd.f32 %v325, %v439
        %v441 = vpop.f32.mrf.mxu0
        %v442 = vadd.f32 %v325, %v441
        %443 = vmatmul.bf16.gmra.mxu0 %v339
        %v444 = vpop.f32.mrf.mxu0
        %v445 = vadd.f32 %v325, %v444
        %v446 = vpop.f32.mrf.mxu0
        %v447 = vadd.f32 %v325, %v446
        %448 = vmatmul.bf16.gmra.mxu0 %v340
        %v449 = vpop.f32.mrf.mxu0
        %v450 = vadd.f32 %v325, %v449
        %v451 = vpop.f32.mrf.mxu0
        %v452 = vadd.f32 %v325, %v451
        %453 = vmatmul.bf16.gmra.mxu0 %v341
        %v454 = vpop.f32.mrf.mxu0
        %v455 = vadd.f32 %v325, %v454
        %v456 = vpop.f32.mrf.mxu0
        %v457 = vadd.f32 %v325, %v456
        %458 = vmatmul.bf16.gmra.mxu0 %v342
        %v459 = vpop.f32.mrf.mxu0
        %v460 = vadd.f32 %v325, %v459
        %v461 = vpop.f32.mrf.mxu0
        %v462 = vadd.f32 %v325, %v461
        %463 = vmatmul.bf16.gmra.mxu0 %v343
        %v464 = vpop.f32.mrf.mxu0
        %v465 = vadd.f32 %v325, %v464
        %v466 = vpop.f32.mrf.mxu0
        %v467 = vadd.f32 %v325, %v466
        %468 = vmatmul.bf16.gmra.mxu0 %v344
        %v469 = vpop.f32.mrf.mxu0
        %v470 = vadd.f32 %v325, %v469
        %v471 = vpop.f32.mrf.mxu0
        %v472 = vadd.f32 %v325, %v471
        %473 = vdwg.mxu0
        %474 = vmatpush.bf16.msra.mxu0 %v408
        %475 = vmatpush.bf16.msra.mxu0 %v406
        %476 = vmatpush.bf16.msra.mxu0 %v404
        %477 = vmatpush.bf16.msra.mxu0 %v402
        %478 = vmatpush.bf16.msra.mxu0 %v400
        %479 = vmatpush.bf16.msra.mxu0 %v398
        %480 = vmatpush.bf16.msra.mxu0 %v396
        %481 = vmatpush.bf16.msra.mxu0 %v394
        %482 = vmatmul.bf16.gmra.mxu0 %v337
        %v483 = vpop.f32.mrf.mxu0
        %v484 = vadd.f32 %v326, %v483
        %v485 = vpop.f32.mrf.mxu0
        %v486 = vadd.f32 %v326, %v485
        %487 = vmatmul.bf16.gmra.mxu0 %v338
        %v488 = vpop.f32.mrf.mxu0
        %v489 = vadd.f32 %v326, %v488
        %v490 = vpop.f32.mrf.mxu0
        %v491 = vadd.f32 %v326, %v490
        %492 = vmatmul.bf16.gmra.mxu0 %v339
        %v493 = vpop.f32.mrf.mxu0
        %v494 = vadd.f32 %v326, %v493
        %v495 = vpop.f32.mrf.mxu0
        %v496 = vadd.f32 %v326, %v495
        %497 = vmatmul.bf16.gmra.mxu0 %v340
        %v498 = vpop.f32.mrf.mxu0
        %v499 = vadd.f32 %v326, %v498
        %v500 = vpop.f32.mrf.mxu0
        %v501 = vadd.f32 %v326, %v500
        %502 = vmatmul.bf16.gmra.mxu0 %v341
        %v503 = vpop.f32.mrf.mxu0
        %v504 = vadd.f32 %v326, %v503
        %v505 = vpop.f32.mrf.mxu0
        %v506 = vadd.f32 %v326, %v505
        %507 = vmatmul.bf16.gmra.mxu0 %v342
        %v508 = vpop.f32.mrf.mxu0
        %v509 = vadd.f32 %v326, %v508
        %v510 = vpop.f32.mrf.mxu0
        %v511 = vadd.f32 %v326, %v510
        %512 = vmatmul.bf16.gmra.mxu0 %v343
        %v513 = vpop.f32.mrf.mxu0
        %v514 = vadd.f32 %v326, %v513
        %v515 = vpop.f32.mrf.mxu0
        %v516 = vadd.f32 %v326, %v515
        %517 = vmatmul.bf16.gmra.mxu0 %v344
        %v518 = vpop.f32.mrf.mxu0
        %v519 = vadd.f32 %v326, %v518
        %v520 = vpop.f32.mrf.mxu0
        %v521 = vadd.f32 %v326, %v520
        %522 = vdwg.mxu0
        %523 = vst [vmem:[%s281] sm:$0xff] %v435
        %524 = vst [vmem:[%s281 + $0x8] sm:$0xff] %v484
        %525 = vst [vmem:[%s281 + $0x10] sm:$0xff] %v437
        %526 = vst [vmem:[%s281 + $0x18] sm:$0xff] %v486
        %527 = vst [vmem:[%s281 + $0x20] sm:$0xff] %v440
        %528 = vst [vmem:[%s281 + $0x28] sm:$0xff] %v489
        %529 = vst [vmem:[%s281 + $0x30] sm:$0xff] %v442
        %530 = vst [vmem:[%s281 + $0x38] sm:$0xff] %v491
        %531 = vst [vmem:[%s281 + $0x40] sm:$0xff] %v445
        %532 = vst [vmem:[%s281 + $0x48] sm:$0xff] %v494
        %533 = vst [vmem:[%s281 + $0x50] sm:$0xff] %v447
        %534 = vst [vmem:[%s281 + $0x58] sm:$0xff] %v496
        %535 = vst [vmem:[%s281 + $0x60] sm:$0xff] %v450
        %536 = vst [vmem:[%s281 + $0x68] sm:$0xff] %v499
        %537 = vst [vmem:[%s281 + $0x70] sm:$0xff] %v452
        %538 = vst [vmem:[%s281 + $0x78] sm:$0xff] %v501
        %539 = vst [vmem:[%s281 + $0x80] sm:$0xff] %v455
        %540 = vst [vmem:[%s281 + $0x88] sm:$0xff] %v504
        %541 = vst [vmem:[%s281 + $0x90] sm:$0xff] %v457
        %542 = vst [vmem:[%s281 + $0x98] sm:$0xff] %v506
        %543 = vst [vmem:[%s281 + $0xa0] sm:$0xff] %v460
        %544 = vst [vmem:[%s281 + $0xa8] sm:$0xff] %v509
        %545 = vst [vmem:[%s281 + $0xb0] sm:$0xff] %v462
        %546 = vst [vmem:[%s281 + $0xb8] sm:$0xff] %v511
        %547 = vst [vmem:[%s281 + $0xc0] sm:$0xff] %v465
        %548 = vst [vmem:[%s281 + $0xc8] sm:$0xff] %v514
        %549 = vst [vmem:[%s281 + $0xd0] sm:$0xff] %v467
        %550 = vst [vmem:[%s281 + $0xd8] sm:$0xff] %v516
        %551 = vst [vmem:[%s281 + $0xe0] sm:$0xff] %v470
        %552 = vst [vmem:[%s281 + $0xe8] sm:$0xff] %v519
        %553 = vst [vmem:[%s281 + $0xf0] sm:$0xff] %v472
        %554 = vst [vmem:[%s281 + $0xf8] sm:$0xff] %v521
        %s555 = sand.u32 %s109, 1
        %s556 = scalar_lea.sflag [#allocation4], %s555
        %s557 = sand.u32 %s109, 1
        %s558 = smul.addr %s557, 256
        %s559 = scalar_lea.vmem [#allocation3], %s558
        // Predicated region
        $region71: #{mlp_forward.1} parent=65 // pred_check
          %p560 = pneg %p119
        $region72: #{mlp_forward.1} parent=65 // pred_check_branch
          %562 = sbr.rel (%p560) target = $region74
        $region73: #{mlp_forward.1} parent=65 // pred_region
          %s563 = smul.u32 16, %s22
          %565 = vsyncadd %s556, 0
          %s566 = smul.addr %s563, 2
          %s567 = smul.addr %s21, 64
          %s568 = sadd.s32 %s566, %s567
          %s569 = smul.addr %s568, 8
          %s570 = scalar_lea.hbm %s3, %s569
          %s571 = sshll.u32 %s559, 4
          %s572 = int_to_ptr.vmem [resolvable:$true] %s571
          %s573 = sshll.u32 %s570, 4
          %s574 = int_to_ptr.hbm [resolvable:$true] %s573
          %579 = dma.vmem_to_hbm [thread:$0]  %s572, 4096, %s574, %s556, 256, 256, 16
        $region74: #{mlp_forward.1} parent=65 // pred_fallthru
          _
      $region66: #{mlp_forward.1} parent=5 // pred_fallthru
        _
      %p580 = scmp.le.s32.totalorder 2, %s12
      // Predicated region
      $region75: #{mlp_forward.1} parent=5 // pred_check
        %p581 = pneg %p580
      $region76: #{mlp_forward.1} parent=5 // pred_check_branch
        %583 = sbr.rel (%p581) target = $region78
      $region77: #{mlp_forward.1} parent=5 // pred_region
        %s584 = ssub.s32 %s12, 2
        // Predicated region
        $region79: #{mlp_forward.1} parent=77 // pred_check
          %p585 = pneg %p125
        $region80: #{mlp_forward.1} parent=77 // pred_check_branch
          %587 = sbr.rel (%p585) target = $region82
        $region81: #{mlp_forward.1} parent=77 // pred_region
          %s588 = sand.u32 %s110, 1
          %s589 = scalar_lea.sflag [#allocation4], %s588
          %s590 = sand.u32 %s110, 1
          %s591 = smul.addr %s590, 256
          %s592 = scalar_lea.vmem [#allocation3], %s591
          %594 = dma.done %s589, 4096
        $region82: #{mlp_forward.1} parent=77 // pred_fallthru
          _
      $region78: #{mlp_forward.1} parent=5 // pred_fallthru
        _
    $region6: #{mlp_forward.1} parent=1 // loop_footer
      %s16 = sadd.s32 1, %s12
    $region7: #{mlp_forward.1} parent=1 // loop_footer_branch
      %11 = sbr.rel target = $region3
    $region8: #{mlp_forward.1} parent=1 // loop_exit
      _
    %595 = vsyncpa [#allocation4], 1
    %s596 = scalar_lea.sflag [#allocation4], 1
    %597 = vsyncpa %s596, 1

</llo_original>
